<compile_context>
chip_gen: v7x
topology: tpu7x:2x2x1
jax: 0.10.0
libtpu: 0.0.40
codegen_flags: <defaults>
</compile_context>

<pallas_src>
import math
from functools import partial

import jax
import jax.numpy as jnp
from jax.experimental import pallas as pl
from jax.experimental.pallas import tpu as pltpu


# ----------------------------------------------------------------------------
# tiling helpers
# ----------------------------------------------------------------------------
_LANE = 128
_SUBLANE = 8
_VMEM_TILE_BUDGET = 32 * 1024 * 1024   # double-buffered tile budget (v7x-safe)


def _round_up(x, m):
    return ((x + m - 1) // m) * m


def _pick_tile(dim, target, align):
    """Largest tile <= target that divides `dim` and is `align`-aligned,
    falling back to the full dimension (a full-extent block is always legal)."""
    if dim <= target:
        return dim
    start = target - (target % align)
    for t in range(start, 0, -align):
        if dim % t == 0:
            return t
    return dim


def _choose_row_tile(M, need_fn):
    """Largest 8-aligned divisor of M whose double-buffered tiles fit budget."""
    tm = _pick_tile(M, 8, _SUBLANE)
    for target in (1024, 512, 256, 128, 64, 32, 16, 8):
        cand = _pick_tile(M, target, _SUBLANE)
        if need_fn(cand) <= _VMEM_TILE_BUDGET:
            tm = cand
            break
    return tm


def _vmem_limit(need_bytes):
    # generous headroom, but stay under v7x's 64 MiB per-TensorCore VMEM
    return int(min(max(need_bytes + (8 << 20), 32 << 20), 60 << 20))


def _gelu_tanh(x):
    c = 0.7978845608028654  # sqrt(2/pi)
    return 0.5 * x * (1.0 + jnp.tanh(c * (x + 0.044715 * x * x * x)))


# ----------------------------------------------------------------------------
# tiled matmul (+ bias, optional GELU, optional fused residual add)
# ----------------------------------------------------------------------------
def _matmul_kernel(*refs, activation, has_residual):
    if has_residual:
        x_ref, w_ref, bias_ref, res_ref, o_ref = refs
    else:
        x_ref, w_ref, bias_ref, o_ref = refs
        res_ref = None
    acc = jnp.dot(x_ref[...], w_ref[...], preferred_element_type=jnp.float32)
    acc = acc + bias_ref[...].astype(jnp.float32)
    if activation == "gelu":
        acc = _gelu_tanh(acc)
    if res_ref is not None:
        acc = acc + res_ref[...].astype(jnp.float32)
    o_ref[...] = acc.astype(o_ref.dtype)


def matmul_bias(x, w, b, residual=None, activation=None, out_dtype=jnp.bfloat16):
    """y = x @ w + b [+ gelu] [+ residual].  x:(M,K) bf16, w:(K,N) bf16."""
    M, K = x.shape
    K2, N = w.shape
    assert K == K2
    tn = _pick_tile(N, 512, _LANE)
    out_bytes = jnp.dtype(out_dtype).itemsize
    has_res = residual is not None

    def need(tm):
        n = tm * K * 2 + K * tn * 2 + tn * 4 + tm * tn * out_bytes
        if has_res:
            n += tm * tn * 2
        return 2 * n  # double-buffered

    tm = _choose_row_tile(M, need)

    in_specs = [
        pl.BlockSpec((tm, K), lambda i, j: (i, 0)),
        pl.BlockSpec((K, tn), lambda i, j: (0, j)),
        pl.BlockSpec((1, tn), lambda i, j: (0, j)),
    ]
    args = [x, w, b.reshape(1, N).astype(jnp.float32)]
    if has_res:
        in_specs.append(pl.BlockSpec((tm, tn), lambda i, j: (i, j)))
        args.append(residual)

    kernel = partial(_matmul_kernel, activation=activation, has_residual=has_res)
    cost = pl.CostEstimate(
        flops=2 * M * N * K,
        transcendentals=M * N if activation == "gelu" else 0,
        bytes_accessed=2 * (M * K + K * N + 2 * M * N))
    return pl.pallas_call(
        kernel,
        out_shape=jax.ShapeDtypeStruct((M, N), out_dtype),
        grid=(M // tm, N // tn),
        in_specs=in_specs,
        out_specs=pl.BlockSpec((tm, tn), lambda i, j: (i, j)),
        compiler_params=pltpu.CompilerParams(
            dimension_semantics=("parallel", "parallel"),
            vmem_limit_bytes=_vmem_limit(need(tm))),
        cost_estimate=cost,
    )(*args)


# ----------------------------------------------------------------------------
# fused LayerNorm + matmul (+ optional bias, optional GELU)
# ----------------------------------------------------------------------------
def _ln_matmul_kernel(*refs, activation, eps, has_bias):
    if has_bias:
        x_ref, g_ref, beta_ref, w_ref, bias_ref, o_ref = refs
    else:
        x_ref, g_ref, beta_ref, w_ref, o_ref = refs
        bias_ref = None
    x = x_ref[...].astype(jnp.float32)
    mean = jnp.mean(x, axis=-1, keepdims=True)
    xc = x - mean
    var = jnp.mean(xc * xc, axis=-1, keepdims=True)
    h = xc * jax.lax.rsqrt(var + eps) * g_ref[...] + beta_ref[...]
    h = h.astype(jnp.bfloat16)
    acc = jnp.dot(h, w_ref[...], preferred_element_type=jnp.float32)
    if bias_ref is not None:
        acc = acc + bias_ref[...].astype(jnp.float32)
    if activation == "gelu":
        acc = _gelu_tanh(acc)
    o_ref[...] = acc.astype(o_ref.dtype)


def ln_matmul_bias(x, gamma, beta, w, b=None, activation=None,
                   out_dtype=jnp.bfloat16, eps=1e-5):
    """y = LayerNorm(x) @ w [+ b] [+ gelu]; w is (K, N)."""
    M, K = x.shape
    K2, N = w.shape
    assert K == K2
    tn = _pick_tile(N, 512, _LANE)
    out_bytes = jnp.dtype(out_dtype).itemsize
    has_bias = b is not None

    def need(tm):
        n = tm * K * 2 + K * tn * 2 + 2 * K * 4 + tm * tn * out_bytes
        if has_bias:
            n += tn * 4
        return 2 * n  # double-buffered

    tm = _choose_row_tile(M, need)

    in_specs = [
        pl.BlockSpec((tm, K), lambda i, j: (i, 0)),
        pl.BlockSpec((1, K), lambda i, j: (0, 0)),
        pl.BlockSpec((1, K), lambda i, j: (0, 0)),
        pl.BlockSpec((K, tn), lambda i, j: (0, j)),
    ]
    args = [x,
            gamma.reshape(1, K).astype(jnp.float32),
            beta.reshape(1, K).astype(jnp.float32),
            w]
    if has_bias:
        in_specs.append(pl.BlockSpec((1, tn), lambda i, j: (0, j)))
        args.append(b.reshape(1, N).astype(jnp.float32))

    kernel = partial(_ln_matmul_kernel, activation=activation, eps=eps,
                     has_bias=has_bias)
    cost = pl.CostEstimate(
        flops=2 * M * N * K,
        transcendentals=M * N if activation == "gelu" else 0,
        bytes_accessed=2 * (M * K + K * N + M * N))
    return pl.pallas_call(
        kernel,
        out_shape=jax.ShapeDtypeStruct((M, N), out_dtype),
        grid=(M // tm, N // tn),
        in_specs=in_specs,
        out_specs=pl.BlockSpec((tm, tn), lambda i, j: (i, j)),
        compiler_params=pltpu.CompilerParams(
            dimension_semantics=("parallel", "parallel"),
            vmem_limit_bytes=_vmem_limit(need(tm))),
        cost_estimate=cost,
    )(*args)


# ----------------------------------------------------------------------------
# flash-style causal attention reading directly from the fused QKV tensor
# ----------------------------------------------------------------------------
def _flash_attn_kernel(q_ref, k_ref, v_ref, o_ref, m_ref, l_ref, acc_ref, *,
                       scale, hpb, hd, tq, tkv):
    qi = pl.program_id(2)
    ki = pl.program_id(3)
    nk = pl.num_programs(3)

    @pl.when(ki == 0)
    def _init():
        m_ref[...] = jnp.full(m_ref.shape, -1e30, jnp.float32)
        l_ref[...] = jnp.zeros(l_ref.shape, jnp.float32)
        acc_ref[...] = jnp.zeros(acc_ref.shape, jnp.float32)

    # last KV tile containing any unmasked key for this query tile; beyond it
    # both DMA (clamped index_map) and compute (pl.when) are skipped.
    ki_last = ((qi + 1) * tq - 1) // tkv

    @pl.when(ki <= ki_last)
    def _update():
        q = q_ref[0]    # (tq,  hpb*hd) bf16
        k = k_ref[0]    # (tkv, hpb*hd) bf16
        v = v_ref[0]
        row = qi * tq + jax.lax.broadcasted_iota(jnp.int32, (tq, tkv), 0)
        col = ki * tkv + jax.lax.broadcasted_iota(jnp.int32, (tq, tkv), 1)
        causal = col <= row
        alphas, pvs = [], []
        for h in range(hpb):
            sl = slice(h * hd, (h + 1) * hd)
            s = jax.lax.dot_general(
                q[:, sl], k[:, sl],
                dimension_numbers=(((1,), (1,)), ((), ())),
                preferred_element_type=jnp.float32) * scale          # (tq, tkv) f32
            s = jnp.where(causal, s, -1e30)
            m_prev = m_ref[h]                                        # (tq, 1)
            m_new = jnp.maximum(m_prev, jnp.max(s, axis=-1, keepdims=True))
            alpha = jnp.exp(m_prev - m_new)
            p = jnp.exp(s - m_new)                                   # f32
            l_ref[h] = alpha * l_ref[h] + jnp.sum(p, axis=-1, keepdims=True)
            m_ref[h] = m_new
            alphas.append(jnp.broadcast_to(alpha, (tq, hd)))
            pvs.append(jnp.dot(p.astype(jnp.bfloat16), v[:, sl],
                               preferred_element_type=jnp.float32))
        # single full-lane-width accumulator update (no 64-lane RMW slices)
        alpha_full = jnp.concatenate(alphas, axis=-1) if hpb > 1 else alphas[0]
        pv_full = jnp.concatenate(pvs, axis=-1) if hpb > 1 else pvs[0]
        acc_ref[...] = alpha_full * acc_ref[...] + pv_full

    @pl.when(ki == nk - 1)
    def _finalize():
        invs = [jnp.broadcast_to(pl.reciprocal(l_ref[h], approx=True), (tq, hd))
                for h in range(hpb)]
        inv_full = jnp.concatenate(invs, axis=-1) if hpb > 1 else invs[0]
        # one lane-dense store of the whole (tq, hpb*hd) tile
        o_ref[0] = (acc_ref[...] * inv_full).astype(o_ref.dtype)


def causal_attention(qkv, n_head, out_dtype=jnp.bfloat16):
    """qkv: (B, T, 3*D) fused projection (token-major, head slices along lanes).
    Returns (B, T, D) in the same token-major layout (no host-side transposes)."""
    B, T, three_d = qkv.shape
    D = three_d // 3
    hd = D // n_head
    # batch heads per block so the lane width is >= 256 where possible
    hpb = min(n_head, max(1, 256 // hd))
    while n_head % hpb != 0:
        hpb -= 1
    n_grp = n_head // hpb
    ghd = hpb * hd
    # TODO(synk): if ghd ends up < 128 (e.g. odd n_head with hd=64), pad heads.
    tq = _pick_tile(T, 256, _SUBLANE)
    tkv = tq   # equal q/kv tiles -> no fully-masked rows inside processed tiles
    scale = 1.0 / math.sqrt(hd)

    def kv_clamp(qi, ki):
        return jnp.minimum(ki, ((qi + 1) * tq - 1) // tkv)

    q_spec = pl.BlockSpec((1, tq, ghd), lambda b, h, qi, ki: (b, qi, h))
    k_spec = pl.BlockSpec((1, tkv, ghd),
                          lambda b, h, qi, ki: (b, kv_clamp(qi, ki), n_grp + h))
    v_spec = pl.BlockSpec((1, tkv, ghd),
                          lambda b, h, qi, ki: (b, kv_clamp(qi, ki), 2 * n_grp + h))
    o_spec = pl.BlockSpec((1, tq, ghd), lambda b, h, qi, ki: (b, qi, h))

    kernel = partial(_flash_attn_kernel, scale=scale, hpb=hpb, hd=hd,
                     tq=tq, tkv=tkv)
    tile_bytes = tq * ghd
    need = 2 * 4 * tile_bytes * 2 + tile_bytes * 4 + 2 * hpb * tq * 4
    cost = pl.CostEstimate(
        flops=4 * B * n_head * T * T * hd,
        transcendentals=B * n_head * T * T,
        bytes_accessed=2 * B * T * (three_d + D))
    return pl.pallas_call(
        kernel,
        out_shape=jax.ShapeDtypeStruct((B, T, D), out_dtype),
        grid=(B, n_grp, T // tq, T // tkv),
        in_specs=[q_spec, k_spec, v_spec],
        out_specs=o_spec,
        scratch_shapes=[
            pltpu.VMEM((hpb, tq, 1), jnp.float32),   # running max m
            pltpu.VMEM((hpb, tq, 1), jnp.float32),   # running sum l
            pltpu.VMEM((tq, ghd), jnp.float32),      # output accumulator
        ],
        compiler_params=pltpu.CompilerParams(
            dimension_semantics=("parallel", "parallel", "parallel", "arbitrary"),
            vmem_limit_bytes=_vmem_limit(need)),
        cost_estimate=cost,
    )(qkv, qkv, qkv)


# ----------------------------------------------------------------------------
# Parameter init (deterministic, mirrors GPT._init_weights); weights in bf16.
# wte is zero-padded to a 128-multiple vocab and the tied lm_head weight is
# pre-transposed once to (D, vocab_padded) so the lm_head kernel uses the
# plain (K, N) path (no per-tile XLU transpose, lane-dense vocab tiles).
# ----------------------------------------------------------------------------
def init_params(key, *, vocab_size, block_size, n_layer, n_head, n_embd):
    D = n_embd
    vocab_padded = _round_up(vocab_size, _LANE)
    proj_std = 0.02 * (2 * n_layer) ** (-0.5)   # NANOGPT_SCALE_INIT on c_proj layers
    keys = jax.random.split(key, 2 + 4 * n_layer)
    wdt = jnp.bfloat16

    def normal(k, shape, std):
        return (std * jax.random.normal(k, shape, jnp.float32)).astype(wdt)

    wte = normal(keys[0], (vocab_size, D), 0.02)
    if vocab_padded != vocab_size:
        wte = jnp.pad(wte, ((0, vocab_padded - vocab_size), (0, 0)))

    params = {
        "wte": wte,                      # (vocab_padded, D): embedding gather
        "lm_head_w": wte.T,              # (D, vocab_padded): tied weight, transposed once
        "wpe": normal(keys[1], (block_size, D), 0.02),
        "lnf_g": jnp.ones((D,), jnp.float32),
        "lnf_b": jnp.zeros((D,), jnp.float32),
        "blocks": [],
    }
    for l in range(n_layer):
        k0, k1, k2, k3 = keys[2 + 4 * l: 2 + 4 * (l + 1)]
        blk = {
            "ln1_g": jnp.ones((D,), jnp.float32),
            "ln1_b": jnp.zeros((D,), jnp.float32),
            # weights stored as (in, out) so kernels compute x @ W directly
            "attn_w": normal(k0, (D, 3 * D), 0.02),
            "attn_b": jnp.zeros((3 * D,), jnp.float32),
            "attn_proj_w": normal(k1, (D, D), proj_std),
            "attn_proj_b": jnp.zeros((D,), jnp.float32),
            "ln2_g": jnp.ones((D,), jnp.float32),
            "ln2_b": jnp.zeros((D,), jnp.float32),
            "fc_w": normal(k2, (D, 4 * D), 0.02),
            "fc_b": jnp.zeros((4 * D,), jnp.float32),
            "proj_w": normal(k3, (4 * D, D), proj_std),
            "proj_b": jnp.zeros((D,), jnp.float32),
        }
        params["blocks"].append(blk)
    return params


# ----------------------------------------------------------------------------
# Forward pass (embedding gather + loss are JAX glue; hot paths are Pallas)
# ----------------------------------------------------------------------------
def gpt_forward(params, idx, cfg, targets=None):
    B, T = idx.shape
    D = cfg["n_embd"]
    H = cfg["n_head"]
    V = cfg["vocab_size"]
    assert T <= cfg["block_size"]

    # token + positional embeddings (gather is glue; no matmul hot path)
    tok_emb = jnp.take(params["wte"], idx, axis=0)            # (B, T, D) bf16
    pos_emb = params["wpe"][:T]                               # (T, D)    bf16
    x = (tok_emb + pos_emb[None, :, :]).reshape(B * T, D).astype(jnp.bfloat16)

    for blk in params["blocks"]:
        # ---- attention sub-block: fused LN + QKV proj, flash attn, proj+residual
        qkv = ln_matmul_bias(x, blk["ln1_g"], blk["ln1_b"],
                             blk["attn_w"], blk["attn_b"])     # (B*T, 3D) bf16
        attn = causal_attention(qkv.reshape(B, T, 3 * D), H)  # (B, T, D) bf16
        x = matmul_bias(attn.reshape(B * T, D),
                        blk["attn_proj_w"], blk["attn_proj_b"],
                        residual=x)                            # x + c_proj(attn)

        # ---- MLP sub-block: fused LN + fc + GELU, then proj + residual
        h = ln_matmul_bias(x, blk["ln2_g"], blk["ln2_b"],
                           blk["fc_w"], blk["fc_b"], activation="gelu")
        x = matmul_bias(h, blk["proj_w"], blk["proj_b"], residual=x)

    # final LayerNorm fused into the tied lm_head (pre-transposed, padded
    # vocab -> 512-wide lane-dense tiles; no bias add)
    logits_padded = ln_matmul_bias(x, params["lnf_g"], params["lnf_b"],
                                   params["lm_head_w"], None,
                                   out_dtype=jnp.float32)      # (B*T, Vpad) f32
    logits2d = logits_padded[:, :V]                            # drop padded cols
    logits = logits2d.reshape(B, T, V)

    loss = None
    if targets is not None:
        # TODO(synk): fuse cross-entropy (row logsumexp + target gather) into the
        # lm_head kernel so full f32 logits never round-trip HBM during training.
        lse = jax.nn.logsumexp(logits2d, axis=-1)
        tgt = targets.reshape(-1)
        picked = jnp.take_along_axis(logits2d, tgt[:, None], axis=-1)[:, 0]
        loss = jnp.mean(lse - picked)
    return logits, loss


# ----------------------------------------------------------------------------
if __name__ == "__main__":
    # small shapes; vocab_size deliberately NOT a 128-multiple to exercise the
    # padded-vocab lm_head path; n_embd chosen so attention blocks are 128-lane.
    cfg = dict(vocab_size=100, block_size=16, n_layer=2, n_head=2, n_embd=128)
    B, T = 2, 8

    key = jax.random.PRNGKey(0)
    pkey, ikey, tkey = jax.random.split(key, 3)
    params = init_params(pkey, **cfg)
    idx = jax.random.randint(ikey, (B, T), 0, cfg["vocab_size"], dtype=jnp.int32)
    tgt = jax.random.randint(tkey, (B, T), 0, cfg["vocab_size"], dtype=jnp.int32)

    logits, loss = gpt_forward(params, idx, cfg, targets=None)
    logits = jax.block_until_ready(logits)
    assert logits.shape == (B, T, cfg["vocab_size"])
    assert loss is None
    assert bool(jnp.all(jnp.isfinite(logits)))

    logits2, loss2 = gpt_forward(params, idx, cfg, targets=tgt)
    loss2 = jax.block_until_ready(loss2)
    assert bool(jnp.isfinite(loss2))
    print("KERNEL_OK")
</pallas_src>

<mosaic_0001>
module attributes {stable_mosaic.version = 11 : i64} {
  func.func @_ln_matmul_kernel(%arg0: i32, %arg1: i32, %arg2: memref<16x128xbf16, #tpu.memory_space<vmem>>, %arg3: memref<1x128xf32, #tpu.memory_space<vmem>>, %arg4: memref<1x128xf32, #tpu.memory_space<vmem>>, %arg5: memref<128x384xbf16, #tpu.memory_space<vmem>>, %arg6: memref<1x384xf32, #tpu.memory_space<vmem>>, %arg7: memref<16x384xbf16, #tpu.memory_space<vmem>>) attributes {dimension_semantics = [#tpu.dimension_semantics<parallel>, #tpu.dimension_semantics<parallel>], iteration_bounds = array<i64: 1, 1>, scalar_prefetch = 0 : i64, scratch_operands = 0 : i64, tpu.core_type = #tpu.core_type<tc>, window_params = [{transform_indices = @transform_0, window_bounds = array<i64: 16, 128>}, {pipeline_mode = #tpu.pipeline_mode<synchronous>, transform_indices = @transform_1, window_bounds = array<i64: 1, 128>}, {pipeline_mode = #tpu.pipeline_mode<synchronous>, transform_indices = @transform_2, window_bounds = array<i64: 1, 128>}, {transform_indices = @transform_3, window_bounds = array<i64: 128, 384>}, {transform_indices = @transform_4, window_bounds = array<i64: 1, 384>}, {transform_indices = @transform_5, window_bounds = array<i64: 16, 384>}]} {
    %c0 = arith.constant 0 : index
    %c0_0 = arith.constant 0 : index
    %0 = vector.load %arg2[%c0, %c0_0] : memref<16x128xbf16, #tpu.memory_space<vmem>>, vector<16x128xbf16>
    %1 = arith.extf %0 : vector<16x128xbf16> to vector<16x128xf32>
    %cst = arith.constant dense<0.000000e+00> : vector<16xf32>
    %2 = vector.multi_reduction <add>, %1, %cst [1] : vector<16x128xf32> to vector<16xf32>
    %3 = vector.shape_cast %2 : vector<16xf32> to vector<16x1xf32>
    %cst_1 = arith.constant 1.280000e+02 : f32
    %4 = vector.broadcast %cst_1 : f32 to vector<16x1xf32>
    %5 = arith.divf %3, %4 : vector<16x1xf32>
    %6 = vector.broadcast %5 : vector<16x1xf32> to vector<16x128xf32>
    %7 = arith.subf %1, %6 : vector<16x128xf32>
    %8 = arith.mulf %7, %7 : vector<16x128xf32>
    %cst_2 = arith.constant dense<0.000000e+00> : vector<16xf32>
    %9 = vector.multi_reduction <add>, %8, %cst_2 [1] : vector<16x128xf32> to vector<16xf32>
    %10 = vector.shape_cast %9 : vector<16xf32> to vector<16x1xf32>
    %cst_3 = arith.constant 1.280000e+02 : f32
    %11 = vector.broadcast %cst_3 : f32 to vector<16x1xf32>
    %12 = arith.divf %10, %11 : vector<16x1xf32>
    %cst_4 = arith.constant 9.99999974E-6 : f32
    %13 = vector.broadcast %cst_4 : f32 to vector<16x1xf32>
    %14 = arith.addf %12, %13 : vector<16x1xf32>
    %15 = math.rsqrt %14 : vector<16x1xf32>
    %16 = vector.broadcast %15 : vector<16x1xf32> to vector<16x128xf32>
    %17 = arith.mulf %7, %16 : vector<16x128xf32>
    %c0_5 = arith.constant 0 : index
    %c0_6 = arith.constant 0 : index
    %18 = vector.load %arg3[%c0_5, %c0_6] : memref<1x128xf32, #tpu.memory_space<vmem>>, vector<1x128xf32>
    %19 = vector.broadcast %18 : vector<1x128xf32> to vector<16x128xf32>
    %20 = arith.mulf %17, %19 : vector<16x128xf32>
    %c0_7 = arith.constant 0 : index
    %c0_8 = arith.constant 0 : index
    %21 = vector.load %arg4[%c0_7, %c0_8] : memref<1x128xf32, #tpu.memory_space<vmem>>, vector<1x128xf32>
    %22 = vector.broadcast %21 : vector<1x128xf32> to vector<16x128xf32>
    %23 = arith.addf %20, %22 : vector<16x128xf32>
    %24 = arith.truncf %23 : vector<16x128xf32> to vector<16x128xbf16>
    %c0_9 = arith.constant 0 : index
    %c0_10 = arith.constant 0 : index
    %25 = vector.load %arg5[%c0_9, %c0_10] : memref<128x384xbf16, #tpu.memory_space<vmem>>, vector<128x384xbf16>
    %cst_11 = arith.constant dense<0.000000e+00> : vector<16x384xf32>
    %26 = tpu.matmul %24, %25, %cst_11 {dimension_numbers = #tpu.dot_dimension_numbers<[1], [0], [0], [1], [0, 0, 1, 1], [], []>} : vector<16x128xbf16>, vector<128x384xbf16>, vector<16x384xf32> -> vector<16x384xf32>
    %c0_12 = arith.constant 0 : index
    %c0_13 = arith.constant 0 : index
    %27 = vector.load %arg6[%c0_12, %c0_13] : memref<1x384xf32, #tpu.memory_space<vmem>>, vector<1x384xf32>
    %28 = vector.broadcast %27 : vector<1x384xf32> to vector<16x384xf32>
    %29 = arith.addf %26, %28 : vector<16x384xf32>
    %30 = arith.truncf %29 : vector<16x384xf32> to vector<16x384xbf16>
    %c0_14 = arith.constant 0 : index
    %c0_15 = arith.constant 0 : index
    %31 = vector.load %arg7[%c0_14, %c0_15] : memref<16x384xbf16, #tpu.memory_space<vmem>>, vector<16x384xbf16>
    tpu.vector_store %arg7[%c0_14, %c0_15], %30 {strides = array<i32>} : memref<16x384xbf16, #tpu.memory_space<vmem>>, vector<16x384xbf16>,
    return
  }
  func.func @transform_0(%arg0: i32, %arg1: i32) -> (i32, i32) {
    %c0_i32 = arith.constant 0 : i32
    %c0_i32_0 = arith.constant 0 : i32
    return %arg0, %c0_i32 : i32, i32
  }
  func.func @transform_1(%arg0: i32, %arg1: i32) -> (i32, i32) {
    %c0_i32 = arith.constant 0 : i32
    %c0_i32_0 = arith.constant 0 : i32
    %c0_i32_1 = arith.constant 0 : i32
    return %c0_i32, %c0_i32_0 : i32, i32
  }
  func.func @transform_2(%arg0: i32, %arg1: i32) -> (i32, i32) {
    %c0_i32 = arith.constant 0 : i32
    %c0_i32_0 = arith.constant 0 : i32
    %c0_i32_1 = arith.constant 0 : i32
    return %c0_i32, %c0_i32_0 : i32, i32
  }
  func.func @transform_3(%arg0: i32, %arg1: i32) -> (i32, i32) {
    %c0_i32 = arith.constant 0 : i32
    %c0_i32_0 = arith.constant 0 : i32
    return %c0_i32, %arg1 : i32, i32
  }
  func.func @transform_4(%arg0: i32, %arg1: i32) -> (i32, i32) {
    %c0_i32 = arith.constant 0 : i32
    %c0_i32_0 = arith.constant 0 : i32
    return %c0_i32, %arg1 : i32, i32
  }
  func.func @transform_5(%arg0: i32, %arg1: i32) -> (i32, i32) {
    %c0_i32 = arith.constant 0 : i32
    return %arg0, %arg1 : i32, i32
  }
}

</mosaic_0001>

<llo_original>
// kernel: tpu_custom_call.1
$region0: #{tpu_custom_call.1}
  #allocation0 [shape = 'u32[]', space=smem, size = 0x4, offset = 0x4, fixed_abs, tag = 'smem constant byte address 0x4 - core index']
  #allocation1 [shape = 'u32[144,128]{1,0:T(1,128)}', space=vmem, size = 0x12000, scoped, tag = 'internal scratch']
  %s0 = inlined_call_operand.hbm [shape: bf16[16,128], index: 0, kind: input, shape index: {}]
  %s1 = inlined_call_operand.vmem [shape: f32[1,128], index: 1, kind: input, shape index: {}]
  %s2 = inlined_call_operand.vmem [shape: f32[1,128], index: 2, kind: input, shape index: {}]
  %s3 = inlined_call_operand.hbm [shape: bf16[128,384], index: 3, kind: input, shape index: {}]
  %s4 = inlined_call_operand.vmem [shape: f32[1,384], index: 4, kind: input, shape index: {}]
  %s5 = inlined_call_operand.hbm [shape: bf16[16,384], index: 5, kind: output, shape index: {}]
  %s6 = sld [smem:[#allocation0]]
  $region38: #{tpu_custom_call.1} parent=0
    _
  %s8 = ssub.s32 1, %s6
  %s9 = scalar_select 0, %s8, %s6
  $region1: #{tpu_custom_call.1} parent=0
    #allocation2 [shape = 'u8[4096]{0}', space=vmem, size = 0x1000, scoped, tag = 'input window, operand 0, single buffered']
    #allocation3 [shape = 's32[1]{0}', space=sflag, size = 0x4, scoped, tag = 'scoped memory for tpu_custom_call.1']
    #allocation4 [shape = 's32[1]{0}', space=sflag, size = 0x4, scoped, tag = 'scoped memory for tpu_custom_call.1']
    #allocation5 [shape = 'u8[98304]{0}', space=vmem, size = 0x18000, scoped, tag = 'input window, operand 3, single buffered']
    #allocation6 [shape = 's32[1]{0}', space=sflag, size = 0x4, scoped, tag = 'scoped memory for tpu_custom_call.1']
    #allocation7 [shape = 'u8[12288]{0}', space=vmem, size = 0x3000, scoped, tag = 'output window, operand 0, single buffered']
    %10 = vsyncpa [#allocation3], 0
    %11 = vsyncpa [#allocation6], 0
    %12 = vsyncpa [#allocation4], 0
    // Predicated region
    $region2: #{tpu_custom_call.1} parent=1 // pred_check
      _
    $region3: #{tpu_custom_call.1} parent=1 // pred_check_branch
      %14 = sbr.rel (0) target = $region5
    $region4: #{tpu_custom_call.1} parent=1 // pred_region
      %s16 = ssub.s32 128, 128
      %17 = vsyncadd [#allocation3], %s16
      %s18 = sshll.u32 [#allocation2], 4
      %s19 = int_to_ptr.vmem [resolvable:$true] %s18
      %24 = dma.hbm_to_vmem [thread:$0]  %s0, 128, %s19, [#allocation3], 64, 64, 4
    $region5: #{tpu_custom_call.1} parent=1 // pred_fallthru
      _
    // Predicated region
    $region6: #{tpu_custom_call.1} parent=1 // pred_check
      _
    $region7: #{tpu_custom_call.1} parent=1 // pred_check_branch
      %26 = sbr.rel (0) target = $region9
    $region8: #{tpu_custom_call.1} parent=1 // pred_region
      _
    $region9: #{tpu_custom_call.1} parent=1 // pred_fallthru
      _
    // Predicated region
    $region10: #{tpu_custom_call.1} parent=1 // pred_check
      _
    $region11: #{tpu_custom_call.1} parent=1 // pred_check_branch
      %28 = sbr.rel (0) target = $region13
    $region12: #{tpu_custom_call.1} parent=1 // pred_region
      _
    $region13: #{tpu_custom_call.1} parent=1 // pred_fallthru
      _
    // Predicated region
    $region14: #{tpu_custom_call.1} parent=1 // pred_check
      _
    $region15: #{tpu_custom_call.1} parent=1 // pred_check_branch
      %30 = sbr.rel (0) target = $region17
    $region16: #{tpu_custom_call.1} parent=1 // pred_region
      %s32 = ssub.s32 3072, 3072
      %33 = vsyncadd [#allocation6], %s32
      %s34 = sshll.u32 [#allocation5], 4
      %s35 = int_to_ptr.vmem [resolvable:$true] %s34
      %40 = dma.hbm_to_vmem [thread:$0]  %s3, 3072, %s35, [#allocation6], 192, 192, 12
    $region17: #{tpu_custom_call.1} parent=1 // pred_fallthru
      _
    // Predicated region
    $region18: #{tpu_custom_call.1} parent=1 // pred_check
      _
    $region19: #{tpu_custom_call.1} parent=1 // pred_check_branch
      %42 = sbr.rel (0) target = $region21
    $region20: #{tpu_custom_call.1} parent=1 // pred_region
      _
    $region21: #{tpu_custom_call.1} parent=1 // pred_fallthru
      _
    // Predicated region
    $region22: #{tpu_custom_call.1} parent=1 // pred_check
      _
    $region23: #{tpu_custom_call.1} parent=1 // pred_check_branch
      %44 = sbr.rel (0) target = $region25
    $region24: #{tpu_custom_call.1} parent=1 // pred_region
      %45 = dma.done [#allocation3], 128
    $region25: #{tpu_custom_call.1} parent=1 // pred_fallthru
      _
    // Predicated region
    $region26: #{tpu_custom_call.1} parent=1 // pred_check
      _
    $region27: #{tpu_custom_call.1} parent=1 // pred_check_branch
      %47 = sbr.rel (0) target = $region29
    $region28: #{tpu_custom_call.1} parent=1 // pred_region
      %48 = dma.done [#allocation6], 3072
    $region29: #{tpu_custom_call.1} parent=1 // pred_fallthru
      _
    %v50 = vld [vmem:[#allocation2] sm:$0xf]
    %v51 = vld [vmem:[#allocation2 + $0x4] sm:$0xf]
    %v52 = vunpack.c.l.bf16 %v50
    %v53 = vunpack.c.l.bf16 %v51
    %54 = vadd.xlane.f32.xlu0 %v52
    %v55 = vpop.xlane.xlu0 %54
    %56 = vadd.xlane.f32.xlu0 %v53
    %v57 = vpop.xlane.xlu0 %56
    %v58 = vrcp.pop 128.0
    %v59 = vmul.f32 %v55, %v58
    %v60 = vmul.f32 %v57, %v58
    %v61 = vsub.f32 %v52, %v59
    %v62 = vsub.f32 %v53, %v60
    %v63 = vmul.f32 %v61, %v61
    %v64 = vmul.f32 %v62, %v62
    %65 = vadd.xlane.f32.xlu0 %v63
    %v66 = vpop.xlane.xlu0 %65
    %67 = vadd.xlane.f32.xlu0 %v64
    %v68 = vpop.xlane.xlu0 %67
    %v69 = vmul.f32 %v66, %v58
    %v70 = vmul.f32 %v68, %v58
    %v71 = vadd.f32 %v69, 1e-05
    %v72 = vadd.f32 %v70, 1e-05
    %v73 = vrsqrt.pop %v71
    %v74 = vrsqrt.pop %v72
    %v75 = vmul.f32 %v61, %v73
    %v76 = vmul.f32 %v62, %v74
    %v77 = vld [vmem:[%s1] sm:$0x1]
    %v79 = vlaneseq
    %v80 = vshrl.u32 %v79, 7
    %v81 = vsub.s32 0, %v80
    %v82 = vrot.slane %v77, %v81
    %v84 = vmul.f32 %v75, %v82
    %v85 = vmul.f32 %v76, %v82
    %v86 = vld [vmem:[%s2] sm:$0x1]
    %v88 = vlaneseq
    %v89 = vshrl.u32 %v88, 7
    %v90 = vsub.s32 0, %v89
    %v91 = vrot.slane %v86, %v90
    %v93 = vadd.f32 %v84, %v91
    %v94 = vadd.f32 %v85, %v91
    %v95 = vpack.c.bf16 %v94, %v93
    %v96 = vld [vmem:[#allocation5] sm:$0xff]
    %v97 = vld [vmem:[#allocation5 + $0x8] sm:$0xf]
    %v98 = vld [vmem:[#allocation5 + $0xc] sm:$0xff]
    %v99 = vld [vmem:[#allocation5 + $0x14] sm:$0xf]
    %v100 = vld [vmem:[#allocation5 + $0x18] sm:$0xff]
    %v101 = vld [vmem:[#allocation5 + $0x20] sm:$0xf]
    %v102 = vld [vmem:[#allocation5 + $0x24] sm:$0xff]
    %v103 = vld [vmem:[#allocation5 + $0x2c] sm:$0xf]
    %v104 = vld [vmem:[#allocation5 + $0x30] sm:$0xff]
    %v105 = vld [vmem:[#allocation5 + $0x38] sm:$0xf]
    %v106 = vld [vmem:[#allocation5 + $0x3c] sm:$0xff]
    %v107 = vld [vmem:[#allocation5 + $0x44] sm:$0xf]
    %v108 = vld [vmem:[#allocation5 + $0x48] sm:$0xff]
    %v109 = vld [vmem:[#allocation5 + $0x50] sm:$0xf]
    %v110 = vld [vmem:[#allocation5 + $0x54] sm:$0xff]
    %v111 = vld [vmem:[#allocation5 + $0x5c] sm:$0xf]
    %v112 = vld [vmem:[#allocation5 + $0x60] sm:$0xff]
    %v113 = vld [vmem:[#allocation5 + $0x68] sm:$0xf]
    %v114 = vld [vmem:[#allocation5 + $0x6c] sm:$0xff]
    %v115 = vld [vmem:[#allocation5 + $0x74] sm:$0xf]
    %v116 = vld [vmem:[#allocation5 + $0x78] sm:$0xff]
    %v117 = vld [vmem:[#allocation5 + $0x80] sm:$0xf]
    %v118 = vld [vmem:[#allocation5 + $0x84] sm:$0xff]
    %v119 = vld [vmem:[#allocation5 + $0x8c] sm:$0xf]
    %v120 = vld [vmem:[#allocation5 + $0x90] sm:$0xff]
    %v121 = vld [vmem:[#allocation5 + $0x98] sm:$0xf]
    %v122 = vld [vmem:[#allocation5 + $0x9c] sm:$0xff]
    %v123 = vld [vmem:[#allocation5 + $0xa4] sm:$0xf]
    %v124 = vld [vmem:[#allocation5 + $0xa8] sm:$0xff]
    %v125 = vld [vmem:[#allocation5 + $0xb0] sm:$0xf]
    %v126 = vld [vmem:[#allocation5 + $0xb4] sm:$0xff]
    %v127 = vld [vmem:[#allocation5 + $0xbc] sm:$0xf]
    %v128 = vld [vmem:[%s4] sm:$0x7]
    %v130 = vlaneseq
    %v131 = vshrl.u32 %v130, 7
    %v132 = vsub.s32 0, %v131
    %v133 = vrot.slane %v128, %v132
    %v134 = vlaneseq
    %v135 = vshrl.u32 %v134, 7
    %v136 = vsub.s32 1, %v135
    %v137 = vrot.slane %v128, %v136
    %v138 = vlaneseq
    %v139 = vshrl.u32 %v138, 7
    %v140 = vsub.s32 2, %v139
    %v141 = vrot.slane %v128, %v140
    %v177 = vunpack.c.l.b16 %v96
    %v178 = vunpack.c.h.b16 %v96
    %v179 = vunpack.c.l.b16 %v97
    %v180 = vunpack.c.l.b16 %v98
    %v181 = vunpack.c.h.b16 %v98
    %v182 = vunpack.c.l.b16 %v99
    %v183 = vunpack.c.l.b16 %v100
    %v184 = vunpack.c.h.b16 %v100
    %v185 = vunpack.c.l.b16 %v101
    %v186 = vunpack.c.l.b16 %v102
    %v187 = vunpack.c.h.b16 %v102
    %v188 = vunpack.c.l.b16 %v103
    %v189 = vunpack.c.l.b16 %v104
    %v190 = vunpack.c.h.b16 %v104
    %v191 = vunpack.c.l.b16 %v105
    %v192 = vunpack.c.l.b16 %v106
    %v193 = vunpack.c.h.b16 %v106
    %v194 = vunpack.c.l.b16 %v107
    %v195 = vunpack.c.l.b16 %v108
    %v196 = vunpack.c.h.b16 %v108
    %v197 = vunpack.c.l.b16 %v109
    %v198 = vunpack.c.l.b16 %v110
    %v199 = vunpack.c.h.b16 %v110
    %v200 = vunpack.c.l.b16 %v111
    %v201 = vunpack.c.l.b16 %v112
    %v202 = vunpack.c.h.b16 %v112
    %v203 = vunpack.c.l.b16 %v113
    %v204 = vunpack.c.l.b16 %v114
    %v205 = vunpack.c.h.b16 %v114
    %v206 = vunpack.c.l.b16 %v115
    %v207 = vunpack.c.l.b16 %v116
    %v208 = vunpack.c.h.b16 %v116
    %v209 = vunpack.c.l.b16 %v117
    %v210 = vunpack.c.l.b16 %v118
    %v211 = vunpack.c.h.b16 %v118
    %v212 = vunpack.c.l.b16 %v119
    %v213 = vunpack.c.l.b16 %v120
    %v214 = vunpack.c.h.b16 %v120
    %v215 = vunpack.c.l.b16 %v121
    %v216 = vunpack.c.l.b16 %v122
    %v217 = vunpack.c.h.b16 %v122
    %v218 = vunpack.c.l.b16 %v123
    %v219 = vunpack.c.l.b16 %v124
    %v220 = vunpack.c.h.b16 %v124
    %v221 = vunpack.c.l.b16 %v125
    %v222 = vunpack.c.l.b16 %v126
    %v223 = vunpack.c.h.b16 %v126
    %v224 = vunpack.c.l.b16 %v127
    %v225 = vpack.c.b16 %v180, %v177
    %v226 = vpack.c.b16 %v181, %v178
    %v227 = vpack.c.b16 %v182, %v179
    %v228 = vpack.c.b16 %v186, %v183
    %v229 = vpack.c.b16 %v187, %v184
    %v230 = vpack.c.b16 %v188, %v185
    %v231 = vpack.c.b16 %v192, %v189
    %v232 = vpack.c.b16 %v193, %v190
    %v233 = vpack.c.b16 %v194, %v191
    %v234 = vpack.c.b16 %v198, %v195
    %v235 = vpack.c.b16 %v199, %v196
    %v236 = vpack.c.b16 %v200, %v197
    %v237 = vpack.c.b16 %v204, %v201
    %v238 = vpack.c.b16 %v205, %v202
    %v239 = vpack.c.b16 %v206, %v203
    %v240 = vpack.c.b16 %v210, %v207
    %v241 = vpack.c.b16 %v211, %v208
    %v242 = vpack.c.b16 %v212, %v209
    %v243 = vpack.c.b16 %v216, %v213
    %v244 = vpack.c.b16 %v217, %v214
    %v245 = vpack.c.b16 %v218, %v215
    %v246 = vpack.c.b16 %v222, %v219
    %v247 = vpack.c.b16 %v223, %v220
    %v248 = vpack.c.b16 %v224, %v221
    %273 = vmatprep.subr.bf16.mxu0 %v226
    %274 = vmatpush1.bf16.msra.mxu0 %v225
    %275 = vmatprep.subr.bf16.mxu0 %v229
    %276 = vmatpush1.bf16.msra.mxu0 %v228
    %277 = vmatprep.subr.bf16.mxu0 %v232
    %278 = vmatpush1.bf16.msra.mxu0 %v231
    %279 = vmatprep.subr.bf16.mxu0 %v235
    %280 = vmatpush1.bf16.msra.mxu0 %v234
    %281 = vmatprep.subr.bf16.mxu0 %v238
    %282 = vmatpush1.bf16.msra.mxu0 %v237
    %283 = vmatprep.subr.bf16.mxu0 %v241
    %284 = vmatpush1.bf16.msra.mxu0 %v240
    %285 = vmatprep.subr.bf16.mxu0 %v244
    %286 = vmatpush1.bf16.msra.mxu0 %v243
    %287 = vmatprep.subr.bf16.mxu0 %v247
    %288 = vmatpush1.bf16.msra.mxu0 %v246
    %289 = vmatprep.subr.bf16.mxu0 0
    %290 = vmatpush1.bf16.msra.mxu0 0
    %291 = vmatprep.subr.bf16.mxu0 0
    %292 = vmatpush1.bf16.msra.mxu0 0
    %293 = vmatprep.subr.bf16.mxu0 0
    %294 = vmatpush1.bf16.msra.mxu0 0
    %295 = vmatprep.subr.bf16.mxu0 0
    %296 = vmatpush1.bf16.msra.mxu0 0
    %297 = vmatprep.subr.bf16.mxu0 0
    %298 = vmatpush1.bf16.msra.mxu0 0
    %299 = vmatprep.subr.bf16.mxu0 0
    %300 = vmatpush1.bf16.msra.mxu0 0
    %301 = vmatprep.subr.bf16.mxu0 0
    %302 = vmatpush1.bf16.msra.mxu0 0
    %303 = vmatprep.subr.bf16.mxu0 0
    %304 = vmatpush1.bf16.msra.mxu0 0
    %305 = vmatprep.mubr.bf16.mxu0 0
    %306 = vmatmul.mubr.bf16.gmra.mrb[0].mxu0 %v95
    %v307 = vpop.f32.mrb[0].mxu0
    %v308 = vadd.f32 %v133, %v307
    %v309 = vpop.f32.mrb[0].mxu0
    %v310 = vadd.f32 %v137, %v309
    %v311 = vpop.f32.mrb[0].mxu0
    %v312 = vadd.f32 %v133, %v311
    %v313 = vpop.f32.mrb[0].mxu0
    %v314 = vadd.f32 %v137, %v313
    %315 = vdwg.mxu0
    %316 = vmatprep.subr.bf16.mxu0 0
    %317 = vmatpush1.bf16.msra.mxu0 %v227
    %318 = vmatprep.subr.bf16.mxu0 0
    %319 = vmatpush1.bf16.msra.mxu0 %v230
    %320 = vmatprep.subr.bf16.mxu0 0
    %321 = vmatpush1.bf16.msra.mxu0 %v233
    %322 = vmatprep.subr.bf16.mxu0 0
    %323 = vmatpush1.bf16.msra.mxu0 %v236
    %324 = vmatprep.subr.bf16.mxu0 0
    %325 = vmatpush1.bf16.msra.mxu0 %v239
    %326 = vmatprep.subr.bf16.mxu0 0
    %327 = vmatpush1.bf16.msra.mxu0 %v242
    %328 = vmatprep.subr.bf16.mxu0 0
    %329 = vmatpush1.bf16.msra.mxu0 %v245
    %330 = vmatprep.subr.bf16.mxu0 0
    %331 = vmatpush1.bf16.msra.mxu0 %v248
    %332 = vmatprep.subr.bf16.mxu0 0
    %333 = vmatpush1.bf16.msra.mxu0 0
    %334 = vmatprep.subr.bf16.mxu0 0
    %335 = vmatpush1.bf16.msra.mxu0 0
    %336 = vmatprep.subr.bf16.mxu0 0
    %337 = vmatpush1.bf16.msra.mxu0 0
    %338 = vmatprep.subr.bf16.mxu0 0
    %339 = vmatpush1.bf16.msra.mxu0 0
    %340 = vmatprep.subr.bf16.mxu0 0
    %341 = vmatpush1.bf16.msra.mxu0 0
    %342 = vmatprep.subr.bf16.mxu0 0
    %343 = vmatpush1.bf16.msra.mxu0 0
    %344 = vmatprep.subr.bf16.mxu0 0
    %345 = vmatpush1.bf16.msra.mxu0 0
    %346 = vmatprep.subr.bf16.mxu0 0
    %347 = vmatpush1.bf16.msra.mxu0 0
    %348 = vmatprep.mubr.bf16.mxu0 0
    %349 = vmatmul.mubr.bf16.gmra.mrb[0].mxu0 %v95
    %v350 = vpop.f32.mrb[0].mxu0
    %v351 = vadd.f32 %v141, %v350
    %v352 = vpop.f32.mrb[0].mxu0
    %v353 = vpop.f32.mrb[0].mxu0
    %v354 = vadd.f32 %v141, %v353
    %v355 = vpop.f32.mrb[0].mxu0
    %356 = vdwg.mxu0
    %v357 = vpack.c.bf16 %v312, %v308
    %v358 = vpack.c.bf16 %v314, %v310
    %v359 = vpack.c.bf16 %v354, %v351
    %v363 = vunpack.c.l.b16 %v357
    %v364 = vunpack.c.l.b16 %v358
    %v365 = vunpack.c.l.b16 %v359
    %v366 = vunpack.c.h.b16 %v357
    %v367 = vunpack.c.h.b16 %v358
    %v368 = vunpack.c.h.b16 %v359
    %v369 = vpack.c.b16 %v364, %v363
    %v370 = vpack.c.b16 %v365, %v365
    %v371 = vpack.c.b16 %v367, %v366
    %v372 = vpack.c.b16 %v368, %v368
    %377 = vst [vmem:[#allocation7] sm:$0xff] %v369
    %378 = vst [vmem:[#allocation7 + $0x8] sm:$0xf] %v370
    %379 = vst [vmem:[#allocation7 + $0xc] sm:$0xff] %v371
    %380 = vst [vmem:[#allocation7 + $0x14] sm:$0xf] %v372
    // Predicated region
    $region30: #{tpu_custom_call.1} parent=1 // pred_check
      _
    $region31: #{tpu_custom_call.1} parent=1 // pred_check_branch
      %382 = sbr.rel (0) target = $region33
    $region32: #{tpu_custom_call.1} parent=1 // pred_region
      %s384 = ssub.s32 384, 384
      %385 = vsyncadd [#allocation4], %s384
      %s386 = sshll.u32 [#allocation7], 4
      %s387 = int_to_ptr.vmem [resolvable:$true] %s386
      %392 = dma.vmem_to_hbm [thread:$0]  %s387, 384, %s5, [#allocation4], 192, 192, 12
    $region33: #{tpu_custom_call.1} parent=1 // pred_fallthru
      _
    // Predicated region
    $region34: #{tpu_custom_call.1} parent=1 // pred_check
      _
    $region35: #{tpu_custom_call.1} parent=1 // pred_check_branch
      %394 = sbr.rel (0) target = $region37
    $region36: #{tpu_custom_call.1} parent=1 // pred_region
      %395 = dma.done [#allocation4], 384
    $region37: #{tpu_custom_call.1} parent=1 // pred_fallthru
      _
    %396 = vsyncpa [#allocation3], 1
    %397 = vsyncpa [#allocation6], 1
    %398 = vsyncpa [#allocation4], 1

</llo_original>
